<compile_context>
chip_gen: v7x
topology: tpu7x:2x2x1
jax: 0.10.0
libtpu: 0.0.40
codegen_flags: <defaults>
</compile_context>

<pallas_src>
import jax
import jax.numpy as jnp
from jax.experimental import pallas as pl
from jax.experimental.pallas import tpu as pltpu


_LANE = 128
_SUBLANE = 8


def _round_up(x, m):
    return (x + m - 1) // m * m


def make_focal_loss_kernel(gamma, has_alpha, n_valid):
    gamma = float(gamma)
    gamma_int = int(gamma)
    use_int_gamma = (gamma == gamma_int) and (0 <= gamma_int <= 8)
    n_valid = int(n_valid)

    def body(x_ref, t_ref, a_ref, out_ref):
        i = pl.program_id(0)

        # Natural-layout (TN, C) block -> f32 -> lane-dense (C, TN).  The
        # relayout runs on the XLU (slack in this HBM-bound kernel) and
        # replaces the old wrapper-side pad+transpose that cost a full extra
        # HBM read+write of the logits.
        x = x_ref[...].astype(jnp.float32)          # (TN, C)
        tn = x.shape[0]
        xt = jnp.transpose(x)                       # (C, TN): classes on sublanes, rows on lanes
        c = xt.shape[0]
        t = t_ref[...]                              # (1, TN) int32

        # log-softmax over the class (sublane) axis, gathered at the target.
        # The full log-prob matrix is never materialized and exp(z) is reused
        # for the gather, so the only per-element transcendental is one exp.
        m = jnp.max(xt, axis=0, keepdims=True)      # (1, TN)
        z = xt - m
        ez = jnp.exp(z)
        sumexp = jnp.sum(ez, axis=0, keepdims=True)

        cls = jax.lax.broadcasted_iota(jnp.int32, (c, tn), 0)
        onehot = (cls == t).astype(jnp.float32)     # reused for logit / exp / alpha gathers
        # NOTE: an out-of-range target yields an all-zero one-hot, so that row
        # contributes -(1-pt)^gamma * (-log sumexp) instead of raising like
        # PyTorch's gather would.  Padding lanes of a partial last block are
        # zeroed by the `col < n_valid` mask below.
        z_t = jnp.sum(z * onehot, axis=0, keepdims=True)
        ez_t = jnp.sum(ez * onehot, axis=0, keepdims=True)   # == exp(z_t), no extra per-row exp

        logpt = z_t - jnp.log(sumexp)               # (1, TN)
        # approx=True would push the divide fully onto the EUP fast path; kept
        # exact so the kernel matches the f32 reference tightly.
        pt = ez_t * pl.reciprocal(sumexp, approx=False)

        if has_alpha:
            at = jnp.sum(a_ref[...] * onehot, axis=0, keepdims=True)
            logpt = logpt * at

        if gamma == 0.0:
            loss = -logpt
        else:
            one_m_pt = jnp.maximum(1.0 - pt, 0.0)   # clamp fp rounding (pt can hit 1.0)
            if use_int_gamma:
                mod = one_m_pt
                for _ in range(gamma_int - 1):
                    mod = mod * one_m_pt
            else:
                # exp/log formulation of pow; clamp keeps log finite.
                mod = jnp.exp(gamma * jnp.log(jnp.maximum(one_m_pt, 1e-30)))
            loss = -mod * logpt

        # Mask lanes past N (a partial last block reads unspecified tail data).
        col = i * tn + jax.lax.broadcasted_iota(jnp.int32, (1, tn), 1)
        loss = jnp.where(col < n_valid, loss, 0.0)

        # Independent per-tile partial sum, written to a lane-dense (1, 128)
        # output block so the grid axis can be "parallel" (v7x megacore) and
        # no loop-carried accumulator is needed.
        lane = jax.lax.broadcasted_iota(jnp.int32, (1, _LANE), 1)
        out_ref[...] = jnp.where(lane == 0, jnp.sum(loss), 0.0)

    if has_alpha:
        def kernel(x_ref, t_ref, a_ref, out_ref):
            body(x_ref, t_ref, a_ref, out_ref)
    else:
        def kernel(x_ref, t_ref, out_ref):
            body(x_ref, t_ref, None, out_ref)
    return kernel


def _vmem_budget():
    """(vmem_limit_bytes, tile_budget_bytes) sized per TPU generation."""
    try:
        cap = pltpu.get_tpu_info().vmem_capacity_bytes
    except Exception:
        cap = None
    if cap is not None and cap >= 100 * 1024 * 1024:   # v5e / v6e: 128 MiB physical VMEM
        return 64 * 1024 * 1024, 38 * 1024 * 1024
    # v7x (64 MiB physical) or unknown generation: stay conservative.
    return 32 * 1024 * 1024, 19 * 1024 * 1024


def _pick_row_tile(n, c, itemsize, budget_bytes):
    """Rows per tile: multiple of 128, sized so the double-buffered (TN, C)
    natural-layout block (lane-padded to 128), its f32 staging copy, the
    transposed (C, TN) f32 intermediates and the targets block fit the
    per-generation VMEM budget while keeping >= ~0.5 MiB of useful HBM bytes
    per grid step to amortize the ~0.35 us per-step overhead."""
    c_lane = _round_up(c, _LANE)       # lane padding of the (TN, C) VMEM block
    c_sub = _round_up(c, _SUBLANE)     # sublane padding of the (C, TN) intermediates
    per_row = (2 * c_lane * itemsize       # double-buffered logits input block
               + c_lane * 4                # f32 staging of the loaded tile
               + 8 * c_sub * 4             # transposed f32 intermediates (z, exp, iota, onehot, ...)
               + 12 * _SUBLANE * 4         # (1, TN) row-wise temporaries (m, lse, pt, loss, ...)
               + 2 * _SUBLANE * 4)         # double-buffered (1, TN) int32 targets block
    tn = (budget_bytes // per_row) // _LANE * _LANE
    return int(max(_LANE, min(tn, 16384)))


def focal_loss(outputs, targets, gamma=0.0, alpha=None, size_average=True,
               row_tile=None):
    """outputs: (N, C) float, targets: (N,) int  -> scalar float32 loss."""
    n, c = outputs.shape

    # Alpha handling mirrors the PyTorch module, with real validation.
    if alpha is None:
        alpha_arr = None
    elif isinstance(alpha, (float, int)):
        # PyTorch builds [alpha, 1-alpha]; only meaningful for binary problems.
        assert c <= 2, "scalar alpha implies binary classification (C <= 2)"
        alpha_arr = jnp.asarray([float(alpha), 1.0 - float(alpha)][:c],
                                jnp.float32).reshape(c, 1)
    else:
        a = jnp.asarray(alpha, jnp.float32).reshape(-1)
        assert a.shape[0] == c, "per-class alpha must have exactly C entries"
        alpha_arr = a.reshape(c, 1)

    itemsize = jnp.dtype(outputs.dtype).itemsize
    vmem_limit, tile_budget = _vmem_budget()
    tn = int(row_tile) if row_tile is not None else _pick_row_tile(
        n, c, itemsize, tile_budget)
    if tn >= n:
        tn = n                     # single exact block (block dims == full dims)
    else:
        assert tn % _LANE == 0, "row tile must be a multiple of 128 when it tiles N"
    num_tiles = (n + tn - 1) // tn

    # No padded copy of the logits; targets get a free (1, N) view.
    t2 = targets.reshape(1, n).astype(jnp.int32)

    has_alpha = alpha_arr is not None
    kernel = make_focal_loss_kernel(gamma, has_alpha, n)

    in_specs = [
        pl.BlockSpec((tn, c), lambda i: (i, 0)),   # natural-layout logits tile
        pl.BlockSpec((1, tn), lambda i: (0, i)),   # targets tile
    ]
    args = [outputs, t2]
    if has_alpha:
        in_specs.append(pl.BlockSpec((c, 1), lambda i: (0, 0)))  # resident alpha
        args.append(alpha_arr)

    cost = pl.CostEstimate(
        flops=10 * n * c + 30 * n,
        transcendentals=n * c + 2 * n,
        bytes_accessed=n * c * itemsize + n * 4 + num_tiles * _LANE * 4,
    )

    partials = pl.pallas_call(
        kernel,
        out_shape=jax.ShapeDtypeStruct((1, num_tiles * _LANE), jnp.float32),
        grid_spec=pltpu.PrefetchScalarGridSpec(
            num_scalar_prefetch=0,
            grid=(num_tiles,),
            in_specs=in_specs,
            out_specs=pl.BlockSpec((1, _LANE), lambda i: (0, i)),
        ),
        compiler_params=pltpu.CompilerParams(
            dimension_semantics=("parallel",),   # independent row tiles (v7x megacore)
            vmem_limit_bytes=vmem_limit,
        ),
        cost_estimate=cost,
    )(*args)

    total = jnp.sum(partials)                     # tiny reduce over per-tile partials
    if size_average:
        total = total / float(n)
    return total


def focal_loss_ref(outputs, targets, gamma=0.0, alpha=None, size_average=True):
    """Pure-JAX reference mirroring the PyTorch forward."""
    n, c = outputs.shape
    logp = jax.nn.log_softmax(outputs.astype(jnp.float32), axis=1)
    logpt = jnp.take_along_axis(logp, targets.reshape(n, 1).astype(jnp.int32),
                                axis=1).reshape(-1)
    pt = jnp.exp(logpt)
    if alpha is not None:
        if isinstance(alpha, (float, int)):
            a = jnp.asarray([float(alpha), 1.0 - float(alpha)], jnp.float32)
        else:
            a = jnp.asarray(alpha, jnp.float32)
        logpt = logpt * a[targets]
    loss = -1.0 * (1.0 - pt) ** gamma * logpt
    return jnp.mean(loss) if size_average else jnp.sum(loss)


if __name__ == "__main__":
    key = jax.random.PRNGKey(0)
    k1, k2, k3, k4 = jax.random.split(key, 4)

    # Case 1: per-class alpha, integer gamma, mean reduction (single block).
    N, C = 16, 8
    outputs = jax.random.normal(k1, (N, C), jnp.float32)
    targets = jax.random.randint(k2, (N,), 0, C, jnp.int32)
    alpha = [0.25, 0.75, 0.5, 0.5, 0.25, 0.75, 0.5, 0.5]
    loss = jax.block_until_ready(
        focal_loss(outputs, targets, gamma=2.0, alpha=alpha, size_average=True))
    ref = focal_loss_ref(outputs, targets, gamma=2.0, alpha=alpha, size_average=True)
    assert jnp.allclose(loss, ref, rtol=1e-5, atol=1e-6), (loss, ref)

    # Case 2: forced small row tile -> multi-tile "parallel" grid with a
    # partial (masked) last block; no alpha, gamma=0, sum reduction.
    N2, C2 = 1500, 12
    outputs2 = jax.random.normal(k3, (N2, C2), jnp.float32)
    targets2 = jax.random.randint(k4, (N2,), 0, C2, jnp.int32)
    loss2 = jax.block_until_ready(
        focal_loss(outputs2, targets2, gamma=0.0, alpha=None,
                   size_average=False, row_tile=128))
    ref2 = focal_loss_ref(outputs2, targets2, gamma=0.0, alpha=None, size_average=False)
    assert jnp.allclose(loss2, ref2, rtol=1e-4, atol=1e-4), (loss2, ref2)

    # Case 2b: same data through the auto tile picker (single big block).
    loss2b = jax.block_until_ready(
        focal_loss(outputs2, targets2, gamma=0.0, alpha=None, size_average=False))
    assert jnp.allclose(loss2b, ref2, rtol=1e-4, atol=1e-4), (loss2b, ref2)

    # Case 3: scalar alpha (binary), non-integer gamma.
    N3, C3 = 32, 2
    outputs3 = jax.random.normal(k1, (N3, C3), jnp.float32)
    targets3 = jax.random.randint(k2, (N3,), 0, C3, jnp.int32)
    loss3 = jax.block_until_ready(
        focal_loss(outputs3, targets3, gamma=1.5, alpha=0.25, size_average=True))
    ref3 = focal_loss_ref(outputs3, targets3, gamma=1.5, alpha=0.25, size_average=True)
    assert jnp.allclose(loss3, ref3, rtol=1e-5, atol=1e-6), (loss3, ref3)

    print("KERNEL_OK")
</pallas_src>

<mosaic_0001>
module attributes {stable_mosaic.version = 11 : i64} {
  func.func @kernel(%arg0: i32, %arg1: memref<16x8xf32, #tpu.memory_space<vmem>>, %arg2: memref<1x16xi32, #tpu.memory_space<vmem>>, %arg3: memref<8x1xf32, #tpu.memory_space<vmem>>, %arg4: memref<1x128xf32, #tpu.memory_space<vmem>>) attributes {dimension_semantics = [#tpu.dimension_semantics<parallel>], iteration_bounds = array<i64: 1>, scalar_prefetch = 0 : i64, scratch_operands = 0 : i64, tpu.core_type = #tpu.core_type<tc>, window_params = [{transform_indices = @transform_0, window_bounds = array<i64: 16, 8>}, {transform_indices = @transform_1, window_bounds = array<i64: 1, 16>}, {pipeline_mode = #tpu.pipeline_mode<synchronous>, transform_indices = @transform_2, window_bounds = array<i64: 8, 1>}, {transform_indices = @transform_3, window_bounds = array<i64: 1, 128>}]} {
    %c0 = arith.constant 0 : index
    %c0_0 = arith.constant 0 : index
    %0 = vector.load %arg1[%c0, %c0_0] : memref<16x8xf32, #tpu.memory_space<vmem>>, vector<16x8xf32>
    %1 = tpu.transpose %0, [1, 0] : vector<16x8xf32> -> vector<8x16xf32>
    %c0_1 = arith.constant 0 : index
    %c0_2 = arith.constant 0 : index
    %2 = vector.load %arg2[%c0_1, %c0_2] : memref<1x16xi32, #tpu.memory_space<vmem>>, vector<1x16xi32>
    %cst = arith.constant dense<0xFF800000> : vector<16xf32>
    %3 = vector.multi_reduction <maximumf>, %1, %cst [0] : vector<8x16xf32> to vector<16xf32>
    %4 = vector.shape_cast %3 : vector<16xf32> to vector<1x16xf32>
    %5 = vector.broadcast %4 : vector<1x16xf32> to vector<8x16xf32>
    %6 = arith.subf %1, %5 : vector<8x16xf32>
    %7 = math.exp %6 : vector<8x16xf32>
    %cst_3 = arith.constant dense<0.000000e+00> : vector<16xf32>
    %8 = vector.multi_reduction <add>, %7, %cst_3 [0] : vector<8x16xf32> to vector<16xf32>
    %9 = vector.shape_cast %8 : vector<16xf32> to vector<1x16xf32>
    %10 = tpu.iota {dimensions = array<i32: 0>} : vector<8x16xi32>
    %11 = vector.broadcast %2 : vector<1x16xi32> to vector<8x16xi32>
    %12 = arith.cmpi eq, %10, %11 : vector<8x16xi32>
    %13 = arith.extui %12 : vector<8x16xi1> to vector<8x16xi32>
    %14 = arith.sitofp %13 : vector<8x16xi32> to vector<8x16xf32>
    %15 = arith.mulf %6, %14 : vector<8x16xf32>
    %cst_4 = arith.constant dense<0.000000e+00> : vector<16xf32>
    %16 = vector.multi_reduction <add>, %15, %cst_4 [0] : vector<8x16xf32> to vector<16xf32>
    %17 = vector.shape_cast %16 : vector<16xf32> to vector<1x16xf32>
    %18 = arith.mulf %7, %14 : vector<8x16xf32>
    %cst_5 = arith.constant dense<0.000000e+00> : vector<16xf32>
    %19 = vector.multi_reduction <add>, %18, %cst_5 [0] : vector<8x16xf32> to vector<16xf32>
    %20 = vector.shape_cast %19 : vector<16xf32> to vector<1x16xf32>
    %21 = math.log %9 : vector<1x16xf32>
    %22 = arith.subf %17, %21 : vector<1x16xf32>
    %23 = tpu.reciprocal %9 : vector<1x16xf32> -> vector<1x16xf32>
    %24 = arith.mulf %20, %23 : vector<1x16xf32>
    %c0_6 = arith.constant 0 : index
    %c0_7 = arith.constant 0 : index
    %25 = vector.load %arg3[%c0_6, %c0_7] : memref<8x1xf32, #tpu.memory_space<vmem>>, vector<8x1xf32>
    %26 = vector.broadcast %25 : vector<8x1xf32> to vector<8x16xf32>
    %27 = arith.mulf %26, %14 : vector<8x16xf32>
    %cst_8 = arith.constant dense<0.000000e+00> : vector<16xf32>
    %28 = vector.multi_reduction <add>, %27, %cst_8 [0] : vector<8x16xf32> to vector<16xf32>
    %29 = vector.shape_cast %28 : vector<16xf32> to vector<1x16xf32>
    %30 = arith.mulf %22, %29 : vector<1x16xf32>
    %cst_9 = arith.constant 1.000000e+00 : f32
    %31 = vector.broadcast %cst_9 : f32 to vector<1x16xf32>
    %32 = arith.subf %31, %24 : vector<1x16xf32>
    %cst_10 = arith.constant 0.000000e+00 : f32
    %33 = vector.broadcast %cst_10 : f32 to vector<1x16xf32>
    %34 = arith.maximumf %32, %33 : vector<1x16xf32>
    %35 = arith.mulf %34, %34 : vector<1x16xf32>
    %cst_11 = arith.constant 0.000000e+00 : f32
    %36 = vector.broadcast %cst_11 : f32 to vector<1x16xf32>
    %37 = arith.subf %36, %35 : vector<1x16xf32>
    %38 = arith.mulf %37, %30 : vector<1x16xf32>
    %c16_i32 = arith.constant 16 : i32
    %39 = arith.muli %arg0, %c16_i32 : i32
    %40 = tpu.iota {dimensions = array<i32: 1>} : vector<1x16xi32>
    %41 = vector.broadcast %39 : i32 to vector<1x16xi32>
    %42 = arith.addi %41, %40 : vector<1x16xi32>
    %c16_i32_12 = arith.constant 16 : i32
    %43 = vector.broadcast %c16_i32_12 : i32 to vector<1x16xi32>
    %44 = arith.cmpi slt, %42, %43 : vector<1x16xi32>
    %cst_13 = arith.constant 0.000000e+00 : f32
    %45 = vector.broadcast %cst_13 : f32 to vector<1x16xf32>
    %46 = arith.select %44, %38, %45 : vector<1x16xi1>, vector<1x16xf32>
    %47 = tpu.iota {dimensions = array<i32: 1>} : vector<1x128xi32>
    %c0_i32 = arith.constant 0 : i32
    %48 = vector.broadcast %c0_i32 : i32 to vector<1x128xi32>
    %49 = arith.cmpi eq, %47, %48 : vector<1x128xi32>
    %50 = vector.shape_cast %46 : vector<1x16xf32> to vector<1x1x16xf32>
    %cst_14 = arith.constant dense<0.000000e+00> : vector<1xf32>
    %51 = vector.multi_reduction <add>, %50, %cst_14 [1, 2] : vector<1x1x16xf32> to vector<1xf32>
    %52 = vector.shape_cast %51 : vector<1xf32> to vector<1x1x1xf32>
    %53 = vector.extract %52[0, 0, 0] : f32 from vector<1x1x1xf32>
    %cst_15 = arith.constant 0.000000e+00 : f32
    %54 = vector.broadcast %53 : f32 to vector<1x128xf32>
    %55 = vector.broadcast %cst_15 : f32 to vector<1x128xf32>
    %56 = arith.select %49, %54, %55 : vector<1x128xi1>, vector<1x128xf32>
    %c0_16 = arith.constant 0 : index
    %c0_17 = arith.constant 0 : index
    %57 = vector.load %arg4[%c0_16, %c0_17] : memref<1x128xf32, #tpu.memory_space<vmem>>, vector<1x128xf32>
    tpu.vector_store %arg4[%c0_16, %c0_17], %56 {strides = array<i32>} : memref<1x128xf32, #tpu.memory_space<vmem>>, vector<1x128xf32>,
    return
  }
  func.func @transform_0(%arg0: i32) -> (i32, i32) {
    %c0_i32 = arith.constant 0 : i32
    %c0_i32_0 = arith.constant 0 : i32
    return %arg0, %c0_i32 : i32, i32
  }
  func.func @transform_1(%arg0: i32) -> (i32, i32) {
    %c0_i32 = arith.constant 0 : i32
    %c0_i32_0 = arith.constant 0 : i32
    return %c0_i32, %arg0 : i32, i32
  }
  func.func @transform_2(%arg0: i32) -> (i32, i32) {
    %c0_i32 = arith.constant 0 : i32
    %c0_i32_0 = arith.constant 0 : i32
    %c0_i32_1 = arith.constant 0 : i32
    return %c0_i32, %c0_i32_0 : i32, i32
  }
  func.func @transform_3(%arg0: i32) -> (i32, i32) {
    %c0_i32 = arith.constant 0 : i32
    %c0_i32_0 = arith.constant 0 : i32
    return %c0_i32, %arg0 : i32, i32
  }
}

</mosaic_0001>

<llo_original>
// kernel: tpu_custom_call.1
$region0: #{tpu_custom_call.1}
  #allocation0 [shape = 'u32[]', space=smem, size = 0x4, offset = 0x4, fixed_abs, tag = 'smem constant byte address 0x4 - core index']
  #allocation1 [shape = 'u32[144,128]{1,0:T(1,128)}', space=vmem, size = 0x12000, scoped, tag = 'internal scratch']
  %s0 = inlined_call_operand.vmem [shape: f32[16,8], index: 0, kind: input, shape index: {}]
  %s1 = inlined_call_operand.vmem [shape: s32[1,16], index: 1, kind: input, shape index: {}]
  %s2 = inlined_call_operand.vmem [shape: f32[8,1], index: 2, kind: input, shape index: {}]
  %s3 = inlined_call_operand.hbm [shape: f32[1,128], index: 3, kind: output, shape index: {}]
  %s4 = sld [smem:[#allocation0]]
  $region22: #{tpu_custom_call.1} parent=0
    _
  %s6 = ssub.s32 1, %s4
  %s7 = scalar_select 0, %s6, %s4
  $region1: #{tpu_custom_call.1} parent=0
    #allocation2 [shape = 'u8[512]{0}', space=vmem, size = 0x400, scoped, tag = 'output window, operand 0, single buffered']
    #allocation3 [shape = 's32[1]{0}', space=sflag, size = 0x4, scoped, tag = 'scoped memory for tpu_custom_call.1']
    %8 = vsyncpa [#allocation3], 0
    // Predicated region
    $region2: #{tpu_custom_call.1} parent=1 // pred_check
      _
    $region3: #{tpu_custom_call.1} parent=1 // pred_check_branch
      %10 = sbr.rel (0) target = $region5
    $region4: #{tpu_custom_call.1} parent=1 // pred_region
      _
    $region5: #{tpu_custom_call.1} parent=1 // pred_fallthru
      _
    // Predicated region
    $region6: #{tpu_custom_call.1} parent=1 // pred_check
      _
    $region7: #{tpu_custom_call.1} parent=1 // pred_check_branch
      %12 = sbr.rel (0) target = $region9
    $region8: #{tpu_custom_call.1} parent=1 // pred_region
      _
    $region9: #{tpu_custom_call.1} parent=1 // pred_fallthru
      _
    // Predicated region
    $region10: #{tpu_custom_call.1} parent=1 // pred_check
      _
    $region11: #{tpu_custom_call.1} parent=1 // pred_check_branch
      %14 = sbr.rel (0) target = $region13
    $region12: #{tpu_custom_call.1} parent=1 // pred_region
      _
    $region13: #{tpu_custom_call.1} parent=1 // pred_fallthru
      _
    %v15 = vld [vmem:[%s0] sm:$0xff]
    %v16 = vld [vmem:[%s0 + $0x8] sm:$0xff]
    %17 = vxpose.xlu0.b32.start [1/16] %v15, 128
    %18 = vxpose.xlu0.b32.cont [2/16] %v16, 128
    %19 = vxpose.xlu0.b32.cont [3/16] 0.0, 128
    %20 = vxpose.xlu0.b32.cont [4/16] 0.0, 128
    %21 = vxpose.xlu0.b32.cont [5/16] 0.0, 128
    %22 = vxpose.xlu0.b32.cont [6/16] 0.0, 128
    %23 = vxpose.xlu0.b32.cont [7/16] 0.0, 128
    %24 = vxpose.xlu0.b32.cont [8/16] 0.0, 128
    %25 = vxpose.xlu0.b32.cont [9/16] 0.0, 128
    %26 = vxpose.xlu0.b32.cont [10/16] 0.0, 128
    %27 = vxpose.xlu0.b32.cont [11/16] 0.0, 128
    %28 = vxpose.xlu0.b32.cont [12/16] 0.0, 128
    %29 = vxpose.xlu0.b32.cont [13/16] 0.0, 128
    %30 = vxpose.xlu0.b32.cont [14/16] 0.0, 128
    %31 = vxpose.xlu0.b32.cont [15/16] 0.0, 128
    %32 = vxpose.xlu0.b32.end [16/16] 0.0, 128
    %v33 = vpop.trf.xlu0
    %v34 = vpop.trf.xlu0
    %v35 = vpop.trf.xlu0
    %v36 = vpop.trf.xlu0
    %v37 = vpop.trf.xlu0
    %v38 = vpop.trf.xlu0
    %v39 = vpop.trf.xlu0
    %v40 = vpop.trf.xlu0
    %v41 = vpop.trf.xlu0
    %v42 = vpop.trf.xlu0
    %v43 = vpop.trf.xlu0
    %v44 = vpop.trf.xlu0
    %v45 = vpop.trf.xlu0
    %v46 = vpop.trf.xlu0
    %v47 = vpop.trf.xlu0
    %v48 = vpop.trf.xlu0
    %v49 = vld [vmem:[%s1] sm:$0x1]
    %vm50 = vcmask 130048
    %v51 = vsel %vm50, %v33, -inf
    %v52 = vrot.slane %v51, 4
    %v53 = vmax.f32 %v51, %v52
    %v54 = vrot.slane %v53, 2
    %v55 = vmax.f32 %v53, %v54
    %v56 = vrot.slane %v55, 1
    %v57 = vmax.f32 %v55, %v56
    %v58 = vsub.f32 %v33, %v57
    %v59 = vmul.f32 %v58, 1.442695
    %v60 = vpow.pop %v59
    %v61 = vsel %vm50, %v60, 0.0
    %v62 = vrot.slane %v61, 4
    %v63 = vadd.f32 %v61, %v62
    %v64 = vrot.slane %v63, 2
    %v65 = vadd.f32 %v63, %v64
    %v66 = vrot.slane %v65, 1
    %v67 = vadd.f32 %v65, %v66
    %v68 = vlaneseq
    %v69 = vshrl.u32 %v68, 7
    %v70 = vlaneseq
    %v71 = vshrl.u32 %v70, 7
    %v72 = vsub.s32 0, %v71
    %v73 = vrot.slane %v49, %v72
    %vm74 = vcmp.eq.s32.totalorder %v69, %v73
    %v75 = vsel %vm74, 1, 0
    %v76 = vcvt.s32.f32 %v75
    %v77 = vmul.f32 %v58, %v76
    %v78 = vsel %vm50, %v77, 0.0
    %v79 = vrot.slane %v78, 4
    %v80 = vadd.f32 %v78, %v79
    %v81 = vrot.slane %v80, 2
    %v82 = vadd.f32 %v80, %v81
    %v83 = vrot.slane %v82, 1
    %v84 = vadd.f32 %v82, %v83
    %v85 = vmul.f32 %v60, %v76
    %v86 = vsel %vm50, %v85, 0.0
    %v87 = vrot.slane %v86, 4
    %v88 = vadd.f32 %v86, %v87
    %v89 = vrot.slane %v88, 2
    %v90 = vadd.f32 %v88, %v89
    %v91 = vrot.slane %v90, 1
    %v92 = vadd.f32 %v90, %v91
    %v93 = vlog2.pop %v67
    %v94 = vmul.f32 %v93, 0.6931472
    %v95 = vsub.f32 %v84, %v94
    %v96 = vrcp.pop %v67
    %v97 = vmul.f32 %v92, %v96
    %v98 = vld [vmem:[%s2] sm:$0xff]
    %100 = vset.pattern.permute.xlu0 0
    %101 = vperm.xlu0 %100, %v98
    %v102 = vpop.permute.xlu0 %101
    %v104 = vmul.f32 %v102, %v76
    %v105 = vsel %vm50, %v104, 0.0
    %v106 = vrot.slane %v105, 4
    %v107 = vadd.f32 %v105, %v106
    %v108 = vrot.slane %v107, 2
    %v109 = vadd.f32 %v107, %v108
    %v110 = vrot.slane %v109, 1
    %v111 = vadd.f32 %v109, %v110
    %v112 = vmul.f32 %v95, %v111
    %v113 = vsub.f32 1.0, %v97
    %v114 = vmax.f32 %v113, 0.0
    %v115 = vmul.f32 %v114, %v114
    %v116 = vsub.f32 0.0, %v115
    %v117 = vmul.f32 %v116, %v112
    %s118 = smul.u32 0, 16
    %v119 = vlaneseq
    %v120 = vand.u32 %v119, 127
    %v121 = vstv %s118
    %v122 = vadd.s32 %v121, %v120
    %vm123 = vcmp.lt.s32.totalorder %v122, 16
    %v124 = vsel %vm123, %v117, 0.0
    %vm125 = vcmp.eq.s32.totalorder %v120, 0
    %vm126 = vcmask 122880
    %v127 = vsel %vm126, %v124, 0.0
    %128 = vadd.xlane.f32.xlu0 %v127
    %v129 = vpop.xlane.xlu0 %128
    %v130 = vrot.slane %v129, 4
    %v131 = vadd.f32 %v129, %v130
    %v132 = vrot.slane %v131, 2
    %v133 = vadd.f32 %v131, %v132
    %v134 = vrot.slane %v133, 1
    %v135 = vadd.f32 %v133, %v134
    %s136 = vtos %v135
    %v137 = vstv %s136
    %v138 = vsel %vm125, %v137, 0.0
    %139 = vst [vmem:[#allocation2] sm:$0x1] %v138
    // Predicated region
    $region14: #{tpu_custom_call.1} parent=1 // pred_check
      _
    $region15: #{tpu_custom_call.1} parent=1 // pred_check_branch
      %141 = sbr.rel (0) target = $region17
    $region16: #{tpu_custom_call.1} parent=1 // pred_region
      %s143 = ssub.s32 16, 16
      %144 = vsyncadd [#allocation3], %s143
      %s146 = sshll.u32 [#allocation2], 4
      %s147 = int_to_ptr.vmem [resolvable:$true] %s146
      %149 = dma.vmem_to_hbm [thread:$0]  %s147, 16, %s3, [#allocation3]
    $region17: #{tpu_custom_call.1} parent=1 // pred_fallthru
      _
    // Predicated region
    $region18: #{tpu_custom_call.1} parent=1 // pred_check
      _
    $region19: #{tpu_custom_call.1} parent=1 // pred_check_branch
      %151 = sbr.rel (0) target = $region21
    $region20: #{tpu_custom_call.1} parent=1 // pred_region
      %152 = dma.done [#allocation3], 16
    $region21: #{tpu_custom_call.1} parent=1 // pred_fallthru
      _
    %153 = vsyncpa [#allocation3], 1

</llo_original>
